<compile_context>
chip_gen: v6e
topology: v6e:2x2x1
jax: 0.10.0
libtpu: 0.0.40
codegen_flags: <defaults>
</compile_context>

<pallas_src>
import functools

import jax
import jax.numpy as jnp
from jax.experimental import pallas as pl
from jax.experimental.pallas import tpu as pltpu

EPSILON = 1e-10
_LANE = 128
# If all 4 levels (2 inputs + 1 output each) fit comfortably in VMEM even
# with double-buffering (v5e scoped default is 16 MiB), do them in ONE call.
_FUSED_BYTES_BUDGET = 6 << 20


# ----------------------------------------------------------------------------
# Tiling helpers (byte-budgeted, generation-safe)
# ----------------------------------------------------------------------------
def _as_2d(x):
    """Contiguous, metadata-only reshape to a lane-dense 2D slab."""
    total = x.size
    if total % _LANE == 0:
        return x.reshape(total // _LANE, _LANE)
    return x.reshape(-1, x.shape[-1])


def _choose_row_tile(rows, cols, dtype_bytes, min_blocks=1, target_bytes=1 << 20):
    """Row tile (~target bytes per ref per block, multiple of 8)."""
    t = max(8, (target_bytes // max(1, cols * dtype_bytes)) // 8 * 8)
    if min_blocks > 1:
        cap = max(8, (-(-rows // min_blocks)) // 8 * 8)
        t = min(t, cap)
    return rows if t >= rows else t


def _choose_hw_tile(C, HW, dtype_bytes, min_hw_blocks=1, target_bytes=1 << 20):
    """Lane-dense tile of the flattened H*W axis, ~target bytes per ref."""
    if HW <= _LANE:
        return HW
    t = max(_LANE, (target_bytes // max(1, C * dtype_bytes)) // _LANE * _LANE)
    if min_hw_blocks > 1:
        cap = max(_LANE, (-(-HW // min_hw_blocks)) // _LANE * _LANE)
        t = min(t, cap)
    return HW if t >= HW else t


# ----------------------------------------------------------------------------
# Pallas kernels
# ----------------------------------------------------------------------------
def _elementwise_kernel(a_ref, b_ref, o_ref, *, mode):
    a = a_ref[...]
    b = b_ref[...]
    if mode == "add":
        o_ref[...] = a + b
    elif mode == "avg":
        o_ref[...] = (a + b) * 0.5
    elif mode == "max":
        o_ref[...] = jnp.maximum(a, b)
    else:
        raise ValueError(mode)


def _elementwise_multi_kernel(*refs, mode, n_levels):
    """All pyramid levels fused into one launch (8 inputs -> 4 outputs)."""
    ir_refs = refs[:n_levels]
    vi_refs = refs[n_levels:2 * n_levels]
    out_refs = refs[2 * n_levels:]
    for a_ref, b_ref, o_ref in zip(ir_refs, vi_refs, out_refs):
        a = a_ref[...]
        b = b_ref[...]
        if mode == "add":
            o_ref[...] = a + b
        elif mode == "avg":
            o_ref[...] = (a + b) * 0.5
        elif mode == "max":
            o_ref[...] = jnp.maximum(a, b)
        else:
            raise ValueError(mode)


def _spa_kernel(ir_ref, vi_ref, out_ref):
    # block: (1, C, hw_tile) -- lane-dense last dim
    ir = ir_ref[...]
    vi = vi_ref[...]
    # Spatial attention (spatial_type='mean'): mean over the channel dim,
    # computed in f32 (free for f32 inputs, exact & cheap for bf16).
    s1 = jnp.mean(ir.astype(jnp.float32), axis=1, keepdims=True)   # (1,1,hw)
    s2 = jnp.mean(vi.astype(jnp.float32), axis=1, keepdims=True)
    e1 = jnp.exp(s1)
    e2 = jnp.exp(s2)
    d = e1 + e2 + EPSILON
    # EUP reciprocal + one Newton step: no VPU divide, full f32 accuracy.
    inv = pl.reciprocal(d, approx=True)
    inv = inv * (2.0 - d * inv)
    w1 = e1 * inv
    w2 = e2 * inv
    out_ref[...] = (w1 * ir + w2 * vi).astype(out_ref.dtype)


def _nuclear_combine_kernel(ir_ref, vi_ref, w_ref, out_ref):
    # ir/vi block: (1, C, hw_tile); w block: (2, C, 1) f32 per-channel weights
    w1 = w_ref[0:1]                              # (1, C, 1)
    w2 = w_ref[1:2]
    out_ref[...] = (w1 * ir_ref[...] + w2 * vi_ref[...]).astype(out_ref.dtype)


# ----------------------------------------------------------------------------
# Wrappers (pallas_call plumbing)
# ----------------------------------------------------------------------------
def _fused_small_elementwise(ir_list, vi_list, mode):
    """One pallas_call over all levels; no packing, no extra HBM passes."""
    shapes = [x.shape for x in ir_list]
    a2 = [_as_2d(x) for x in ir_list]
    b2 = [_as_2d(x) for x in vi_list]
    n = len(a2)

    def full_spec(shape):
        return pl.BlockSpec(shape, lambda i: (0, 0))

    in_specs = [full_spec(x.shape) for x in a2] + [full_spec(x.shape) for x in b2]
    out_specs = [full_spec(x.shape) for x in a2]
    out_shape = [jax.ShapeDtypeStruct(x.shape, x.dtype) for x in a2]

    outs = pl.pallas_call(
        functools.partial(_elementwise_multi_kernel, mode=mode, n_levels=n),
        out_shape=out_shape,
        grid=(1,),
        in_specs=in_specs,
        out_specs=out_specs,
        compiler_params=pltpu.CompilerParams(dimension_semantics=("arbitrary",)),
    )(*a2, *b2)
    return [o.reshape(s) for o, s in zip(outs, shapes)]


def _fuse_elementwise_one(ir, vi, mode):
    """Per-level streaming kernel, byte-budgeted row tiling (big levels)."""
    shape = ir.shape
    a2 = _as_2d(ir)
    b2 = _as_2d(vi)
    rows, cols = a2.shape
    rt = _choose_row_tile(rows, cols, ir.dtype.itemsize, min_blocks=2)

    spec = pl.BlockSpec((rt, cols), lambda i: (i, 0))
    out = pl.pallas_call(
        functools.partial(_elementwise_kernel, mode=mode),
        out_shape=jax.ShapeDtypeStruct((rows, cols), ir.dtype),
        grid=(pl.cdiv(rows, rt),),
        in_specs=[spec, spec],
        out_specs=spec,
        compiler_params=pltpu.CompilerParams(dimension_semantics=("parallel",)),
    )(a2, b2)
    return out.reshape(shape)


def _fuse_elementwise_levels(ir_list, vi_list, mode):
    total_bytes = sum(3 * x.size * x.dtype.itemsize for x in ir_list)
    if total_bytes <= _FUSED_BYTES_BUDGET:
        return _fused_small_elementwise(ir_list, vi_list, mode)
    return [_fuse_elementwise_one(a, b, mode) for a, b in zip(ir_list, vi_list)]


def _fuse_spa(ir, vi):
    N, C, H, W = ir.shape
    HW = H * W
    hw_t = _choose_hw_tile(C, HW, ir.dtype.itemsize,
                           min_hw_blocks=2 if N == 1 else 1)
    ir3 = ir.reshape(N, C, HW)
    vi3 = vi.reshape(N, C, HW)

    spec = pl.BlockSpec((1, C, hw_t), lambda n, h: (n, 0, h))
    out = pl.pallas_call(
        _spa_kernel,
        out_shape=jax.ShapeDtypeStruct((N, C, HW), ir.dtype),
        grid=(N, pl.cdiv(HW, hw_t)),
        in_specs=[spec, spec],
        out_specs=spec,
        compiler_params=pltpu.CompilerParams(
            dimension_semantics=("parallel", "parallel")),
    )(ir3, vi3)
    return out.reshape(N, C, H, W)


def _nuclear_pooling(x):
    """Per-channel nuclear norm (sum of singular values), batch index 0 only.

    Mirrors torch nuclear_pooling.  Uses the Gram-matrix eigenvalue path
    (sum sqrt(eig(A A^T)) == sum of singular values) — far faster on TPU than
    the serial XLA SVD routine.
    """
    # TODO(synk): eigendecomposition/SVD has no Pallas TPU primitive; this
    # reduction runs in plain JAX (XLA), only the weighted combine is Pallas.
    a = x[0].astype(jnp.float32) + EPSILON            # (C, H, W)
    _, H, W = a.shape
    if H <= W:
        g = jnp.einsum("chw,ckw->chk", a, a)          # (C, H, H)
    else:
        g = jnp.einsum("chw,chk->cwk", a, a)          # (C, W, W)
    ev = jnp.linalg.eigvalsh(g)
    s = jnp.sqrt(jnp.clip(ev, 0.0, None))
    return jnp.sum(s, axis=-1)                        # (C,) float32


def _fuse_nuclear(ir, vi):
    N, C, H, W = ir.shape
    HW = H * W
    hw_t = _choose_hw_tile(C, HW, ir.dtype.itemsize,
                           min_hw_blocks=2 if N == 1 else 1)

    p1 = _nuclear_pooling(ir)
    p2 = _nuclear_pooling(vi)
    denom = p1 + p2 + EPSILON
    w = jnp.stack([p1 / denom, p2 / denom], axis=0).reshape(2, C, 1)  # f32

    ir3 = ir.reshape(N, C, HW)
    vi3 = vi.reshape(N, C, HW)

    feat = pl.BlockSpec((1, C, hw_t), lambda n, h: (n, 0, h))
    wspec = pl.BlockSpec((2, C, 1), lambda n, h: (0, 0, 0))
    out = pl.pallas_call(
        _nuclear_combine_kernel,
        out_shape=jax.ShapeDtypeStruct((N, C, HW), ir.dtype),
        grid=(N, pl.cdiv(HW, hw_t)),
        in_specs=[feat, feat, wspec],
        out_specs=feat,
        compiler_params=pltpu.CompilerParams(
            dimension_semantics=("parallel", "parallel")),
    )(ir3, vi3, w)
    return out.reshape(N, C, H, W)


class FusionStrategy:
    """JAX/Pallas port of Fusion_strategy (operates on lists of 4 feature maps)."""

    def __init__(self, fs_type):
        if fs_type not in ("add", "avg", "max", "spa", "nuclear"):
            raise ValueError(f"unsupported fs_type: {fs_type}")
        self.fs_type = fs_type

    def __call__(self, en_ir, en_vi):
        if self.fs_type in ("add", "avg", "max"):
            return _fuse_elementwise_levels(list(en_ir), list(en_vi),
                                            self.fs_type)
        if self.fs_type == "spa":
            return [_fuse_spa(a, b) for a, b in zip(en_ir, en_vi)]
        # nuclear
        return [_fuse_nuclear(a, b) for a, b in zip(en_ir, en_vi)]


# ----------------------------------------------------------------------------
# Pure-JAX references (for correctness checks)
# ----------------------------------------------------------------------------
def _ref_fuse(ir, vi, mode):
    if mode == "add":
        return ir + vi
    if mode == "avg":
        return (ir + vi) / 2.0
    if mode == "max":
        return jnp.maximum(ir, vi)
    if mode == "spa":
        s1 = jnp.mean(ir, axis=1, keepdims=True)
        s2 = jnp.mean(vi, axis=1, keepdims=True)
        e1, e2 = jnp.exp(s1), jnp.exp(s2)
        w1 = e1 / (e1 + e2 + EPSILON)
        w2 = e2 / (e1 + e2 + EPSILON)
        return w1 * ir + w2 * vi
    if mode == "nuclear":
        p1 = _nuclear_pooling(ir).reshape(1, -1, 1, 1)
        p2 = _nuclear_pooling(vi).reshape(1, -1, 1, 1)
        w1 = p1 / (p1 + p2 + EPSILON)
        w2 = p2 / (p1 + p2 + EPSILON)
        return w1 * ir + w2 * vi
    raise ValueError(mode)


if __name__ == "__main__":
    key = jax.random.PRNGKey(0)
    # Encoder pyramid: 4 feature maps (N, C, H, W), NCHW like PyTorch.
    shapes = [(2, 4, 16, 16), (2, 8, 16, 16), (2, 16, 16, 16), (2, 32, 16, 16)]

    keys = jax.random.split(key, 2 * len(shapes))
    en_ir = [jax.random.normal(keys[i], s, dtype=jnp.float32)
             for i, s in enumerate(shapes)]
    en_vi = [jax.random.normal(keys[len(shapes) + i], s, dtype=jnp.float32)
             for i, s in enumerate(shapes)]

    ok = True
    for fs_type in ("add", "avg", "max", "spa", "nuclear"):
        fusion = FusionStrategy(fs_type)
        outs = fusion(en_ir, en_vi)
        outs = [jax.block_until_ready(o) for o in outs]
        for i in range(4):
            ref = _ref_fuse(en_ir[i], en_vi[i], fs_type)
            if outs[i].shape != ref.shape or not jnp.allclose(
                    outs[i], ref, atol=1e-5, rtol=1e-5):
                ok = False
                print(f"MISMATCH fs_type={fs_type} level={i}")

    if ok:
        print("KERNEL_OK")
</pallas_src>

<mosaic_0001>
module attributes {stable_mosaic.version = 11 : i64} {
  func.func @_elementwise_multi_kernel(%arg0: i32, %arg1: memref<16x128xf32, #tpu.memory_space<vmem>>, %arg2: memref<32x128xf32, #tpu.memory_space<vmem>>, %arg3: memref<64x128xf32, #tpu.memory_space<vmem>>, %arg4: memref<128x128xf32, #tpu.memory_space<vmem>>, %arg5: memref<16x128xf32, #tpu.memory_space<vmem>>, %arg6: memref<32x128xf32, #tpu.memory_space<vmem>>, %arg7: memref<64x128xf32, #tpu.memory_space<vmem>>, %arg8: memref<128x128xf32, #tpu.memory_space<vmem>>, %arg9: memref<16x128xf32, #tpu.memory_space<vmem>>, %arg10: memref<32x128xf32, #tpu.memory_space<vmem>>, %arg11: memref<64x128xf32, #tpu.memory_space<vmem>>, %arg12: memref<128x128xf32, #tpu.memory_space<vmem>>) attributes {dimension_semantics = [#tpu.dimension_semantics<arbitrary>], iteration_bounds = array<i64: 1>, scalar_prefetch = 0 : i64, scratch_operands = 0 : i64, tpu.core_type = #tpu.core_type<tc>, window_params = [{pipeline_mode = #tpu.pipeline_mode<synchronous>, transform_indices = @transform_0, window_bounds = array<i64: 16, 128>}, {pipeline_mode = #tpu.pipeline_mode<synchronous>, transform_indices = @transform_1, window_bounds = array<i64: 32, 128>}, {pipeline_mode = #tpu.pipeline_mode<synchronous>, transform_indices = @transform_2, window_bounds = array<i64: 64, 128>}, {pipeline_mode = #tpu.pipeline_mode<synchronous>, transform_indices = @transform_3, window_bounds = array<i64: 128, 128>}, {pipeline_mode = #tpu.pipeline_mode<synchronous>, transform_indices = @transform_4, window_bounds = array<i64: 16, 128>}, {pipeline_mode = #tpu.pipeline_mode<synchronous>, transform_indices = @transform_5, window_bounds = array<i64: 32, 128>}, {pipeline_mode = #tpu.pipeline_mode<synchronous>, transform_indices = @transform_6, window_bounds = array<i64: 64, 128>}, {pipeline_mode = #tpu.pipeline_mode<synchronous>, transform_indices = @transform_7, window_bounds = array<i64: 128, 128>}, {pipeline_mode = #tpu.pipeline_mode<synchronous>, transform_indices = @transform_8, window_bounds = array<i64: 16, 128>}, {pipeline_mode = #tpu.pipeline_mode<synchronous>, transform_indices = @transform_9, window_bounds = array<i64: 32, 128>}, {pipeline_mode = #tpu.pipeline_mode<synchronous>, transform_indices = @transform_10, window_bounds = array<i64: 64, 128>}, {pipeline_mode = #tpu.pipeline_mode<synchronous>, transform_indices = @transform_11, window_bounds = array<i64: 128, 128>}]} {
    %c0 = arith.constant 0 : index
    %c0_0 = arith.constant 0 : index
    %0 = vector.load %arg1[%c0, %c0_0] : memref<16x128xf32, #tpu.memory_space<vmem>>, vector<16x128xf32>
    %c0_1 = arith.constant 0 : index
    %c0_2 = arith.constant 0 : index
    %1 = vector.load %arg5[%c0_1, %c0_2] : memref<16x128xf32, #tpu.memory_space<vmem>>, vector<16x128xf32>
    %2 = arith.addf %0, %1 : vector<16x128xf32>
    %c0_3 = arith.constant 0 : index
    %c0_4 = arith.constant 0 : index
    %3 = vector.load %arg9[%c0_3, %c0_4] : memref<16x128xf32, #tpu.memory_space<vmem>>, vector<16x128xf32>
    tpu.vector_store %arg9[%c0_3, %c0_4], %2 {strides = array<i32>} : memref<16x128xf32, #tpu.memory_space<vmem>>, vector<16x128xf32>,
    %c0_5 = arith.constant 0 : index
    %c0_6 = arith.constant 0 : index
    %4 = vector.load %arg2[%c0_5, %c0_6] : memref<32x128xf32, #tpu.memory_space<vmem>>, vector<32x128xf32>
    %c0_7 = arith.constant 0 : index
    %c0_8 = arith.constant 0 : index
    %5 = vector.load %arg6[%c0_7, %c0_8] : memref<32x128xf32, #tpu.memory_space<vmem>>, vector<32x128xf32>
    %6 = arith.addf %4, %5 : vector<32x128xf32>
    %c0_9 = arith.constant 0 : index
    %c0_10 = arith.constant 0 : index
    %7 = vector.load %arg10[%c0_9, %c0_10] : memref<32x128xf32, #tpu.memory_space<vmem>>, vector<32x128xf32>
    tpu.vector_store %arg10[%c0_9, %c0_10], %6 {strides = array<i32>} : memref<32x128xf32, #tpu.memory_space<vmem>>, vector<32x128xf32>,
    %c0_11 = arith.constant 0 : index
    %c0_12 = arith.constant 0 : index
    %8 = vector.load %arg3[%c0_11, %c0_12] : memref<64x128xf32, #tpu.memory_space<vmem>>, vector<64x128xf32>
    %c0_13 = arith.constant 0 : index
    %c0_14 = arith.constant 0 : index
    %9 = vector.load %arg7[%c0_13, %c0_14] : memref<64x128xf32, #tpu.memory_space<vmem>>, vector<64x128xf32>
    %10 = arith.addf %8, %9 : vector<64x128xf32>
    %c0_15 = arith.constant 0 : index
    %c0_16 = arith.constant 0 : index
    %11 = vector.load %arg11[%c0_15, %c0_16] : memref<64x128xf32, #tpu.memory_space<vmem>>, vector<64x128xf32>
    tpu.vector_store %arg11[%c0_15, %c0_16], %10 {strides = array<i32>} : memref<64x128xf32, #tpu.memory_space<vmem>>, vector<64x128xf32>,
    %c0_17 = arith.constant 0 : index
    %c0_18 = arith.constant 0 : index
    %12 = vector.load %arg4[%c0_17, %c0_18] : memref<128x128xf32, #tpu.memory_space<vmem>>, vector<128x128xf32>
    %c0_19 = arith.constant 0 : index
    %c0_20 = arith.constant 0 : index
    %13 = vector.load %arg8[%c0_19, %c0_20] : memref<128x128xf32, #tpu.memory_space<vmem>>, vector<128x128xf32>
    %14 = arith.addf %12, %13 : vector<128x128xf32>
    %c0_21 = arith.constant 0 : index
    %c0_22 = arith.constant 0 : index
    %15 = vector.load %arg12[%c0_21, %c0_22] : memref<128x128xf32, #tpu.memory_space<vmem>>, vector<128x128xf32>
    tpu.vector_store %arg12[%c0_21, %c0_22], %14 {strides = array<i32>} : memref<128x128xf32, #tpu.memory_space<vmem>>, vector<128x128xf32>,
    return
  }
  func.func @transform_0(%arg0: i32) -> (i32, i32) {
    %c0_i32 = arith.constant 0 : i32
    %c0_i32_0 = arith.constant 0 : i32
    %c0_i32_1 = arith.constant 0 : i32
    return %c0_i32, %c0_i32_0 : i32, i32
  }
  func.func @transform_1(%arg0: i32) -> (i32, i32) {
    %c0_i32 = arith.constant 0 : i32
    %c0_i32_0 = arith.constant 0 : i32
    %c0_i32_1 = arith.constant 0 : i32
    return %c0_i32, %c0_i32_0 : i32, i32
  }
  func.func @transform_2(%arg0: i32) -> (i32, i32) {
    %c0_i32 = arith.constant 0 : i32
    %c0_i32_0 = arith.constant 0 : i32
    %c0_i32_1 = arith.constant 0 : i32
    return %c0_i32, %c0_i32_0 : i32, i32
  }
  func.func @transform_3(%arg0: i32) -> (i32, i32) {
    %c0_i32 = arith.constant 0 : i32
    %c0_i32_0 = arith.constant 0 : i32
    %c0_i32_1 = arith.constant 0 : i32
    return %c0_i32, %c0_i32_0 : i32, i32
  }
  func.func @transform_4(%arg0: i32) -> (i32, i32) {
    %c0_i32 = arith.constant 0 : i32
    %c0_i32_0 = arith.constant 0 : i32
    %c0_i32_1 = arith.constant 0 : i32
    return %c0_i32, %c0_i32_0 : i32, i32
  }
  func.func @transform_5(%arg0: i32) -> (i32, i32) {
    %c0_i32 = arith.constant 0 : i32
    %c0_i32_0 = arith.constant 0 : i32
    %c0_i32_1 = arith.constant 0 : i32
    return %c0_i32, %c0_i32_0 : i32, i32
  }
  func.func @transform_6(%arg0: i32) -> (i32, i32) {
    %c0_i32 = arith.constant 0 : i32
    %c0_i32_0 = arith.constant 0 : i32
    %c0_i32_1 = arith.constant 0 : i32
    return %c0_i32, %c0_i32_0 : i32, i32
  }
  func.func @transform_7(%arg0: i32) -> (i32, i32) {
    %c0_i32 = arith.constant 0 : i32
    %c0_i32_0 = arith.constant 0 : i32
    %c0_i32_1 = arith.constant 0 : i32
    return %c0_i32, %c0_i32_0 : i32, i32
  }
  func.func @transform_8(%arg0: i32) -> (i32, i32) {
    %c0_i32 = arith.constant 0 : i32
    %c0_i32_0 = arith.constant 0 : i32
    %c0_i32_1 = arith.constant 0 : i32
    return %c0_i32, %c0_i32_0 : i32, i32
  }
  func.func @transform_9(%arg0: i32) -> (i32, i32) {
    %c0_i32 = arith.constant 0 : i32
    %c0_i32_0 = arith.constant 0 : i32
    %c0_i32_1 = arith.constant 0 : i32
    return %c0_i32, %c0_i32_0 : i32, i32
  }
  func.func @transform_10(%arg0: i32) -> (i32, i32) {
    %c0_i32 = arith.constant 0 : i32
    %c0_i32_0 = arith.constant 0 : i32
    %c0_i32_1 = arith.constant 0 : i32
    return %c0_i32, %c0_i32_0 : i32, i32
  }
  func.func @transform_11(%arg0: i32) -> (i32, i32) {
    %c0_i32 = arith.constant 0 : i32
    %c0_i32_0 = arith.constant 0 : i32
    %c0_i32_1 = arith.constant 0 : i32
    return %c0_i32, %c0_i32_0 : i32, i32
  }
}

</mosaic_0001>

<llo_original>
// kernel: tpu_custom_call.1
$region0: #{tpu_custom_call.1}
  #allocation0 [shape = 'u32[]', space=smem, size = 0x4, offset = 0x4, fixed_abs, tag = 'smem constant byte address 0x4 - core index']
  #allocation1 [shape = 'u32[144,128]{1,0:T(1,128)}', space=vmem, size = 0x12000, scoped, tag = 'internal scratch']
  %s0 = inlined_call_operand.hbm [shape: f32[16,128], index: 0, kind: input, shape index: {}]
  %s1 = inlined_call_operand.hbm [shape: f32[32,128], index: 1, kind: input, shape index: {}]
  %s2 = inlined_call_operand.hbm [shape: f32[64,128], index: 2, kind: input, shape index: {}]
  %s3 = inlined_call_operand.hbm [shape: f32[128,128], index: 3, kind: input, shape index: {}]
  %s4 = inlined_call_operand.hbm [shape: f32[16,128], index: 4, kind: input, shape index: {}]
  %s5 = inlined_call_operand.hbm [shape: f32[32,128], index: 5, kind: input, shape index: {}]
  %s6 = inlined_call_operand.hbm [shape: f32[64,128], index: 6, kind: input, shape index: {}]
  %s7 = inlined_call_operand.hbm [shape: f32[128,128], index: 7, kind: input, shape index: {}]
  %s8 = inlined_call_operand.hbm [shape: f32[16,128], index: 8, kind: output, shape index: {0}]
  %s9 = inlined_call_operand.hbm [shape: f32[32,128], index: 9, kind: output, shape index: {1}]
  %s10 = inlined_call_operand.hbm [shape: f32[64,128], index: 10, kind: output, shape index: {2}]
  %s11 = inlined_call_operand.hbm [shape: f32[128,128], index: 11, kind: output, shape index: {3}]
  %12 = xla_tuple %s8, %s9, %s10, %s11
  %s13 = sld [smem:[#allocation0]]
  $region98: #{tpu_custom_call.1} parent=0
    _
  %s15 = ssub.s32 1, %s13
  %s16 = scalar_select 0, %s15, %s13
  $region1: #{tpu_custom_call.1} parent=0
    #allocation2 [shape = 'u8[8192]{0}', space=vmem, size = 0x2000, scoped, tag = 'input window, operand 0, single buffered']
    #allocation3 [shape = 's32[1]{0}', space=sflag, size = 0x4, scoped, tag = 'scoped memory for tpu_custom_call.1']
    #allocation4 [shape = 's32[1]{0}', space=sflag, size = 0x4, scoped, tag = 'scoped memory for tpu_custom_call.1']
    #allocation5 [shape = 'u8[16384]{0}', space=vmem, size = 0x4000, scoped, tag = 'input window, operand 1, single buffered']
    #allocation6 [shape = 's32[1]{0}', space=sflag, size = 0x4, scoped, tag = 'scoped memory for tpu_custom_call.1']
    #allocation7 [shape = 'u8[32768]{0}', space=vmem, size = 0x8000, scoped, tag = 'input window, operand 2, single buffered']
    #allocation8 [shape = 'u8[65536]{0}', space=vmem, size = 0x10000, scoped, tag = 'input window, operand 3, single buffered']
    #allocation9 [shape = 's32[1]{0}', space=sflag, size = 0x4, scoped, tag = 'scoped memory for tpu_custom_call.1']
    #allocation10 [shape = 'u8[8192]{0}', space=vmem, size = 0x2000, scoped, tag = 'input window, operand 4, single buffered']
    #allocation11 [shape = 'u8[16384]{0}', space=vmem, size = 0x4000, scoped, tag = 'input window, operand 5, single buffered']
    #allocation12 [shape = 's32[1]{0}', space=sflag, size = 0x4, scoped, tag = 'scoped memory for tpu_custom_call.1']
    #allocation13 [shape = 'u8[32768]{0}', space=vmem, size = 0x8000, scoped, tag = 'input window, operand 6, single buffered']
    #allocation14 [shape = 'u8[65536]{0}', space=vmem, size = 0x10000, scoped, tag = 'input window, operand 7, single buffered']
    #allocation15 [shape = 's32[1]{0}', space=sflag, size = 0x4, scoped, tag = 'scoped memory for tpu_custom_call.1']
    #allocation16 [shape = 'u8[8192]{0}', space=vmem, size = 0x2000, scoped, tag = 'output window, operand 0, single buffered']
    #allocation17 [shape = 'u8[16384]{0}', space=vmem, size = 0x4000, scoped, tag = 'output window, operand 1, single buffered']
    #allocation18 [shape = 's32[1]{0}', space=sflag, size = 0x4, scoped, tag = 'scoped memory for tpu_custom_call.1']
    #allocation19 [shape = 'u8[32768]{0}', space=vmem, size = 0x8000, scoped, tag = 'output window, operand 2, single buffered']
    #allocation20 [shape = 'u8[65536]{0}', space=vmem, size = 0x10000, scoped, tag = 'output window, operand 3, single buffered']
    #allocation21 [shape = 's32[1]{0}', space=sflag, size = 0x4, scoped, tag = 'scoped memory for tpu_custom_call.1']
    %17 = vsyncpa [#allocation3], 0
    %18 = vsyncpa [#allocation6], 0
    %19 = vsyncpa [#allocation9], 0
    %20 = vsyncpa [#allocation12], 0
    %21 = vsyncpa [#allocation15], 0
    %22 = vsyncpa [#allocation4], 0
    %23 = vsyncpa [#allocation18], 0
    %24 = vsyncpa [#allocation21], 0
    // Predicated region
    $region2: #{tpu_custom_call.1} parent=1 // pred_check
      _
    $region3: #{tpu_custom_call.1} parent=1 // pred_check_branch
      %26 = sbr.rel (0) target = $region5
    $region4: #{tpu_custom_call.1} parent=1 // pred_region
      %s28 = ssub.s32 256, 256
      %29 = vsyncadd [#allocation3], %s28
      %s30 = sshll.u32 [#allocation2], 4
      %s31 = int_to_ptr.vmem [resolvable:$true] %s30
      %36 = dma.hbm_to_vmem [thread:$0]  %s0, 256, %s31, [#allocation3], 128, 128, 8
    $region5: #{tpu_custom_call.1} parent=1 // pred_fallthru
      _
    // Predicated region
    $region6: #{tpu_custom_call.1} parent=1 // pred_check
      _
    $region7: #{tpu_custom_call.1} parent=1 // pred_check_branch
      %38 = sbr.rel (0) target = $region9
    $region8: #{tpu_custom_call.1} parent=1 // pred_region
      %s40 = ssub.s32 512, 512
      %41 = vsyncadd [#allocation6], %s40
      %s42 = sshll.u32 [#allocation5], 4
      %s43 = int_to_ptr.vmem [resolvable:$true] %s42
      %48 = dma.hbm_to_vmem [thread:$0]  %s1, 512, %s43, [#allocation6], 128, 128, 8
    $region9: #{tpu_custom_call.1} parent=1 // pred_fallthru
      _
    // Predicated region
    $region10: #{tpu_custom_call.1} parent=1 // pred_check
      _
    $region11: #{tpu_custom_call.1} parent=1 // pred_check_branch
      %50 = sbr.rel (0) target = $region13
    $region12: #{tpu_custom_call.1} parent=1 // pred_region
      %s52 = ssub.s32 1024, 1024
      %53 = vsyncadd [#allocation6], %s52
      %s54 = sshll.u32 [#allocation7], 4
      %s55 = int_to_ptr.vmem [resolvable:$true] %s54
      %60 = dma.hbm_to_vmem [thread:$0]  %s2, 1024, %s55, [#allocation6], 128, 128, 8
    $region13: #{tpu_custom_call.1} parent=1 // pred_fallthru
      _
    // Predicated region
    $region14: #{tpu_custom_call.1} parent=1 // pred_check
      _
    $region15: #{tpu_custom_call.1} parent=1 // pred_check_branch
      %62 = sbr.rel (0) target = $region17
    $region16: #{tpu_custom_call.1} parent=1 // pred_region
      %s64 = ssub.s32 2048, 2048
      %65 = vsyncadd [#allocation9], %s64
      %s66 = sshll.u32 [#allocation8], 4
      %s67 = int_to_ptr.vmem [resolvable:$true] %s66
      %72 = dma.hbm_to_vmem [thread:$0]  %s3, 2048, %s67, [#allocation9], 128, 128, 8
    $region17: #{tpu_custom_call.1} parent=1 // pred_fallthru
      _
    // Predicated region
    $region18: #{tpu_custom_call.1} parent=1 // pred_check
      _
    $region19: #{tpu_custom_call.1} parent=1 // pred_check_branch
      %74 = sbr.rel (0) target = $region21
    $region20: #{tpu_custom_call.1} parent=1 // pred_region
      %s76 = ssub.s32 256, 256
      %77 = vsyncadd [#allocation9], %s76
      %s78 = sshll.u32 [#allocation10], 4
      %s79 = int_to_ptr.vmem [resolvable:$true] %s78
      %84 = dma.hbm_to_vmem [thread:$0]  %s4, 256, %s79, [#allocation9], 128, 128, 8
    $region21: #{tpu_custom_call.1} parent=1 // pred_fallthru
      _
    // Predicated region
    $region22: #{tpu_custom_call.1} parent=1 // pred_check
      _
    $region23: #{tpu_custom_call.1} parent=1 // pred_check_branch
      %86 = sbr.rel (0) target = $region25
    $region24: #{tpu_custom_call.1} parent=1 // pred_region
      %s88 = ssub.s32 512, 512
      %89 = vsyncadd [#allocation12], %s88
      %s90 = sshll.u32 [#allocation11], 4
      %s91 = int_to_ptr.vmem [resolvable:$true] %s90
      %96 = dma.hbm_to_vmem [thread:$0]  %s5, 512, %s91, [#allocation12], 128, 128, 8
    $region25: #{tpu_custom_call.1} parent=1 // pred_fallthru
      _
    // Predicated region
    $region26: #{tpu_custom_call.1} parent=1 // pred_check
      _
    $region27: #{tpu_custom_call.1} parent=1 // pred_check_branch
      %98 = sbr.rel (0) target = $region29
    $region28: #{tpu_custom_call.1} parent=1 // pred_region
      %s100 = ssub.s32 1024, 1024
      %101 = vsyncadd [#allocation12], %s100
      %s102 = sshll.u32 [#allocation13], 4
      %s103 = int_to_ptr.vmem [resolvable:$true] %s102
      %108 = dma.hbm_to_vmem [thread:$0]  %s6, 1024, %s103, [#allocation12], 128, 128, 8
    $region29: #{tpu_custom_call.1} parent=1 // pred_fallthru
      _
    // Predicated region
    $region30: #{tpu_custom_call.1} parent=1 // pred_check
      _
    $region31: #{tpu_custom_call.1} parent=1 // pred_check_branch
      %110 = sbr.rel (0) target = $region33
    $region32: #{tpu_custom_call.1} parent=1 // pred_region
      %s112 = ssub.s32 2048, 2048
      %113 = vsyncadd [#allocation15], %s112
      %s114 = sshll.u32 [#allocation14], 4
      %s115 = int_to_ptr.vmem [resolvable:$true] %s114
      %120 = dma.hbm_to_vmem [thread:$0]  %s7, 2048, %s115, [#allocation15], 128, 128, 8
    $region33: #{tpu_custom_call.1} parent=1 // pred_fallthru
      _
    // Predicated region
    $region34: #{tpu_custom_call.1} parent=1 // pred_check
      _
    $region35: #{tpu_custom_call.1} parent=1 // pred_check_branch
      %122 = sbr.rel (0) target = $region37
    $region36: #{tpu_custom_call.1} parent=1 // pred_region
      %123 = dma.done [#allocation3], 256
    $region37: #{tpu_custom_call.1} parent=1 // pred_fallthru
      _
    // Predicated region
    $region38: #{tpu_custom_call.1} parent=1 // pred_check
      _
    $region39: #{tpu_custom_call.1} parent=1 // pred_check_branch
      %125 = sbr.rel (0) target = $region41
    $region40: #{tpu_custom_call.1} parent=1 // pred_region
      %126 = dma.done [#allocation6], 512
    $region41: #{tpu_custom_call.1} parent=1 // pred_fallthru
      _
    // Predicated region
    $region42: #{tpu_custom_call.1} parent=1 // pred_check
      _
    $region43: #{tpu_custom_call.1} parent=1 // pred_check_branch
      %128 = sbr.rel (0) target = $region45
    $region44: #{tpu_custom_call.1} parent=1 // pred_region
      %129 = dma.done [#allocation6], 1024
    $region45: #{tpu_custom_call.1} parent=1 // pred_fallthru
      _
    // Predicated region
    $region46: #{tpu_custom_call.1} parent=1 // pred_check
      _
    $region47: #{tpu_custom_call.1} parent=1 // pred_check_branch
      %131 = sbr.rel (0) target = $region49
    $region48: #{tpu_custom_call.1} parent=1 // pred_region
      %132 = dma.done [#allocation9], 2048
    $region49: #{tpu_custom_call.1} parent=1 // pred_fallthru
      _
    // Predicated region
    $region50: #{tpu_custom_call.1} parent=1 // pred_check
      _
    $region51: #{tpu_custom_call.1} parent=1 // pred_check_branch
      %134 = sbr.rel (0) target = $region53
    $region52: #{tpu_custom_call.1} parent=1 // pred_region
      %135 = dma.done [#allocation9], 256
    $region53: #{tpu_custom_call.1} parent=1 // pred_fallthru
      _
    // Predicated region
    $region54: #{tpu_custom_call.1} parent=1 // pred_check
      _
    $region55: #{tpu_custom_call.1} parent=1 // pred_check_branch
      %137 = sbr.rel (0) target = $region57
    $region56: #{tpu_custom_call.1} parent=1 // pred_region
      %138 = dma.done [#allocation12], 512
    $region57: #{tpu_custom_call.1} parent=1 // pred_fallthru
      _
    // Predicated region
    $region58: #{tpu_custom_call.1} parent=1 // pred_check
      _
    $region59: #{tpu_custom_call.1} parent=1 // pred_check_branch
      %140 = sbr.rel (0) target = $region61
    $region60: #{tpu_custom_call.1} parent=1 // pred_region
      %141 = dma.done [#allocation12], 1024
    $region61: #{tpu_custom_call.1} parent=1 // pred_fallthru
      _
    // Predicated region
    $region62: #{tpu_custom_call.1} parent=1 // pred_check
      _
    $region63: #{tpu_custom_call.1} parent=1 // pred_check_branch
      %143 = sbr.rel (0) target = $region65
    $region64: #{tpu_custom_call.1} parent=1 // pred_region
      %144 = dma.done [#allocation15], 2048
    $region65: #{tpu_custom_call.1} parent=1 // pred_fallthru
      _
    %v145 = vld [vmem:[#allocation2] sm:$0xff]
    %v146 = vld [vmem:[#allocation2 + $0x8] sm:$0xff]
    %v147 = vld [vmem:[#allocation10] sm:$0xff]
    %v148 = vld [vmem:[#allocation10 + $0x8] sm:$0xff]
    %v149 = vadd.f32 %v145, %v147
    %v150 = vadd.f32 %v146, %v148
    %151 = vst [vmem:[#allocation16] sm:$0xff] %v149
    %152 = vst [vmem:[#allocation16 + $0x8] sm:$0xff] %v150
    %v153 = vld [vmem:[#allocation5] sm:$0xff]
    %v154 = vld [vmem:[#allocation5 + $0x8] sm:$0xff]
    %v155 = vld [vmem:[#allocation5 + $0x10] sm:$0xff]
    %v156 = vld [vmem:[#allocation5 + $0x18] sm:$0xff]
    %v157 = vld [vmem:[#allocation11] sm:$0xff]
    %v158 = vld [vmem:[#allocation11 + $0x8] sm:$0xff]
    %v159 = vld [vmem:[#allocation11 + $0x10] sm:$0xff]
    %v160 = vld [vmem:[#allocation11 + $0x18] sm:$0xff]
    %v161 = vadd.f32 %v153, %v157
    %v162 = vadd.f32 %v154, %v158
    %v163 = vadd.f32 %v155, %v159
    %v164 = vadd.f32 %v156, %v160
    %165 = vst [vmem:[#allocation17] sm:$0xff] %v161
    %166 = vst [vmem:[#allocation17 + $0x8] sm:$0xff] %v162
    %167 = vst [vmem:[#allocation17 + $0x10] sm:$0xff] %v163
    %168 = vst [vmem:[#allocation17 + $0x18] sm:$0xff] %v164
    %v169 = vld [vmem:[#allocation7] sm:$0xff]
    %v170 = vld [vmem:[#allocation7 + $0x8] sm:$0xff]
    %v171 = vld [vmem:[#allocation7 + $0x10] sm:$0xff]
    %v172 = vld [vmem:[#allocation7 + $0x18] sm:$0xff]
    %v173 = vld [vmem:[#allocation7 + $0x20] sm:$0xff]
    %v174 = vld [vmem:[#allocation7 + $0x28] sm:$0xff]
    %v175 = vld [vmem:[#allocation7 + $0x30] sm:$0xff]
    %v176 = vld [vmem:[#allocation7 + $0x38] sm:$0xff]
    %v177 = vld [vmem:[#allocation13] sm:$0xff]
    %v178 = vld [vmem:[#allocation13 + $0x8] sm:$0xff]
    %v179 = vld [vmem:[#allocation13 + $0x10] sm:$0xff]
    %v180 = vld [vmem:[#allocation13 + $0x18] sm:$0xff]
    %v181 = vld [vmem:[#allocation13 + $0x20] sm:$0xff]
    %v182 = vld [vmem:[#allocation13 + $0x28] sm:$0xff]
    %v183 = vld [vmem:[#allocation13 + $0x30] sm:$0xff]
    %v184 = vld [vmem:[#allocation13 + $0x38] sm:$0xff]
    %v185 = vadd.f32 %v169, %v177
    %v186 = vadd.f32 %v170, %v178
    %v187 = vadd.f32 %v171, %v179
    %v188 = vadd.f32 %v172, %v180
    %v189 = vadd.f32 %v173, %v181
    %v190 = vadd.f32 %v174, %v182
    %v191 = vadd.f32 %v175, %v183
    %v192 = vadd.f32 %v176, %v184
    %193 = vst [vmem:[#allocation19] sm:$0xff] %v185
    %194 = vst [vmem:[#allocation19 + $0x8] sm:$0xff] %v186
    %195 = vst [vmem:[#allocation19 + $0x10] sm:$0xff] %v187
    %196 = vst [vmem:[#allocation19 + $0x18] sm:$0xff] %v188
    %197 = vst [vmem:[#allocation19 + $0x20] sm:$0xff] %v189
    %198 = vst [vmem:[#allocation19 + $0x28] sm:$0xff] %v190
    %199 = vst [vmem:[#allocation19 + $0x30] sm:$0xff] %v191
    %200 = vst [vmem:[#allocation19 + $0x38] sm:$0xff] %v192
    %v201 = vld [vmem:[#allocation8] sm:$0xff]
    %v202 = vld [vmem:[#allocation8 + $0x8] sm:$0xff]
    %v203 = vld [vmem:[#allocation8 + $0x10] sm:$0xff]
    %v204 = vld [vmem:[#allocation8 + $0x18] sm:$0xff]
    %v205 = vld [vmem:[#allocation8 + $0x20] sm:$0xff]
    %v206 = vld [vmem:[#allocation8 + $0x28] sm:$0xff]
    %v207 = vld [vmem:[#allocation8 + $0x30] sm:$0xff]
    %v208 = vld [vmem:[#allocation8 + $0x38] sm:$0xff]
    %v209 = vld [vmem:[#allocation8 + $0x40] sm:$0xff]
    %v210 = vld [vmem:[#allocation8 + $0x48] sm:$0xff]
    %v211 = vld [vmem:[#allocation8 + $0x50] sm:$0xff]
    %v212 = vld [vmem:[#allocation8 + $0x58] sm:$0xff]
    %v213 = vld [vmem:[#allocation8 + $0x60] sm:$0xff]
    %v214 = vld [vmem:[#allocation8 + $0x68] sm:$0xff]
    %v215 = vld [vmem:[#allocation8 + $0x70] sm:$0xff]
    %v216 = vld [vmem:[#allocation8 + $0x78] sm:$0xff]
    %v217 = vld [vmem:[#allocation14] sm:$0xff]
    %v218 = vld [vmem:[#allocation14 + $0x8] sm:$0xff]
    %v219 = vld [vmem:[#allocation14 + $0x10] sm:$0xff]
    %v220 = vld [vmem:[#allocation14 + $0x18] sm:$0xff]
    %v221 = vld [vmem:[#allocation14 + $0x20] sm:$0xff]
    %v222 = vld [vmem:[#allocation14 + $0x28] sm:$0xff]
    %v223 = vld [vmem:[#allocation14 + $0x30] sm:$0xff]
    %v224 = vld [vmem:[#allocation14 + $0x38] sm:$0xff]
    %v225 = vld [vmem:[#allocation14 + $0x40] sm:$0xff]
    %v226 = vld [vmem:[#allocation14 + $0x48] sm:$0xff]
    %v227 = vld [vmem:[#allocation14 + $0x50] sm:$0xff]
    %v228 = vld [vmem:[#allocation14 + $0x58] sm:$0xff]
    %v229 = vld [vmem:[#allocation14 + $0x60] sm:$0xff]
    %v230 = vld [vmem:[#allocation14 + $0x68] sm:$0xff]
    %v231 = vld [vmem:[#allocation14 + $0x70] sm:$0xff]
    %v232 = vld [vmem:[#allocation14 + $0x78] sm:$0xff]
    %v233 = vadd.f32 %v201, %v217
    %v234 = vadd.f32 %v202, %v218
    %v235 = vadd.f32 %v203, %v219
    %v236 = vadd.f32 %v204, %v220
    %v237 = vadd.f32 %v205, %v221
    %v238 = vadd.f32 %v206, %v222
    %v239 = vadd.f32 %v207, %v223
    %v240 = vadd.f32 %v208, %v224
    %v241 = vadd.f32 %v209, %v225
    %v242 = vadd.f32 %v210, %v226
    %v243 = vadd.f32 %v211, %v227
    %v244 = vadd.f32 %v212, %v228
    %v245 = vadd.f32 %v213, %v229
    %v246 = vadd.f32 %v214, %v230
    %v247 = vadd.f32 %v215, %v231
    %v248 = vadd.f32 %v216, %v232
    %249 = vst [vmem:[#allocation20] sm:$0xff] %v233
    %250 = vst [vmem:[#allocation20 + $0x8] sm:$0xff] %v234
    %251 = vst [vmem:[#allocation20 + $0x10] sm:$0xff] %v235
    %252 = vst [vmem:[#allocation20 + $0x18] sm:$0xff] %v236
    %253 = vst [vmem:[#allocation20 + $0x20] sm:$0xff] %v237
    %254 = vst [vmem:[#allocation20 + $0x28] sm:$0xff] %v238
    %255 = vst [vmem:[#allocation20 + $0x30] sm:$0xff] %v239
    %256 = vst [vmem:[#allocation20 + $0x38] sm:$0xff] %v240
    %257 = vst [vmem:[#allocation20 + $0x40] sm:$0xff] %v241
    %258 = vst [vmem:[#allocation20 + $0x48] sm:$0xff] %v242
    %259 = vst [vmem:[#allocation20 + $0x50] sm:$0xff] %v243
    %260 = vst [vmem:[#allocation20 + $0x58] sm:$0xff] %v244
    %261 = vst [vmem:[#allocation20 + $0x60] sm:$0xff] %v245
    %262 = vst [vmem:[#allocation20 + $0x68] sm:$0xff] %v246
    %263 = vst [vmem:[#allocation20 + $0x70] sm:$0xff] %v247
    %264 = vst [vmem:[#allocation20 + $0x78] sm:$0xff] %v248
    // Predicated region
    $region66: #{tpu_custom_call.1} parent=1 // pred_check
      _
    $region67: #{tpu_custom_call.1} parent=1 // pred_check_branch
      %266 = sbr.rel (0) target = $region69
    $region68: #{tpu_custom_call.1} parent=1 // pred_region
      %s268 = ssub.s32 256, 256
      %269 = vsyncadd [#allocation4], %s268
      %s270 = sshll.u32 [#allocation16], 4
      %s271 = int_to_ptr.vmem [resolvable:$true] %s270
      %276 = dma.vmem_to_hbm [thread:$0]  %s271, 256, %s8, [#allocation4], 128, 128, 8
    $region69: #{tpu_custom_call.1} parent=1 // pred_fallthru
      _
    // Predicated region
    $region70: #{tpu_custom_call.1} parent=1 // pred_check
      _
    $region71: #{tpu_custom_call.1} parent=1 // pred_check_branch
      %278 = sbr.rel (0) target = $region73
    $region72: #{tpu_custom_call.1} parent=1 // pred_region
      %s280 = ssub.s32 512, 512
      %281 = vsyncadd [#allocation18], %s280
      %s282 = sshll.u32 [#allocation17], 4
      %s283 = int_to_ptr.vmem [resolvable:$true] %s282
      %288 = dma.vmem_to_hbm [thread:$0]  %s283, 512, %s9, [#allocation18], 128, 128, 8
    $region73: #{tpu_custom_call.1} parent=1 // pred_fallthru
      _
    // Predicated region
    $region74: #{tpu_custom_call.1} parent=1 // pred_check
      _
    $region75: #{tpu_custom_call.1} parent=1 // pred_check_branch
      %290 = sbr.rel (0) target = $region77
    $region76: #{tpu_custom_call.1} parent=1 // pred_region
      %s292 = ssub.s32 1024, 1024
      %293 = vsyncadd [#allocation18], %s292
      %s294 = sshll.u32 [#allocation19], 4
      %s295 = int_to_ptr.vmem [resolvable:$true] %s294
      %300 = dma.vmem_to_hbm [thread:$0]  %s295, 1024, %s10, [#allocation18], 128, 128, 8
    $region77: #{tpu_custom_call.1} parent=1 // pred_fallthru
      _
    // Predicated region
    $region78: #{tpu_custom_call.1} parent=1 // pred_check
      _
    $region79: #{tpu_custom_call.1} parent=1 // pred_check_branch
      %302 = sbr.rel (0) target = $region81
    $region80: #{tpu_custom_call.1} parent=1 // pred_region
      %s304 = ssub.s32 2048, 2048
      %305 = vsyncadd [#allocation21], %s304
      %s306 = sshll.u32 [#allocation20], 4
      %s307 = int_to_ptr.vmem [resolvable:$true] %s306
      %312 = dma.vmem_to_hbm [thread:$0]  %s307, 2048, %s11, [#allocation21], 128, 128, 8
    $region81: #{tpu_custom_call.1} parent=1 // pred_fallthru
      _
    // Predicated region
    $region82: #{tpu_custom_call.1} parent=1 // pred_check
      _
    $region83: #{tpu_custom_call.1} parent=1 // pred_check_branch
      %314 = sbr.rel (0) target = $region85
    $region84: #{tpu_custom_call.1} parent=1 // pred_region
      %315 = dma.done [#allocation4], 256
    $region85: #{tpu_custom_call.1} parent=1 // pred_fallthru
      _
    // Predicated region
    $region86: #{tpu_custom_call.1} parent=1 // pred_check
      _
    $region87: #{tpu_custom_call.1} parent=1 // pred_check_branch
      %317 = sbr.rel (0) target = $region89
    $region88: #{tpu_custom_call.1} parent=1 // pred_region
      %318 = dma.done [#allocation18], 512
    $region89: #{tpu_custom_call.1} parent=1 // pred_fallthru
      _
    // Predicated region
    $region90: #{tpu_custom_call.1} parent=1 // pred_check
      _
    $region91: #{tpu_custom_call.1} parent=1 // pred_check_branch
      %320 = sbr.rel (0) target = $region93
    $region92: #{tpu_custom_call.1} parent=1 // pred_region
      %321 = dma.done [#allocation18], 1024
    $region93: #{tpu_custom_call.1} parent=1 // pred_fallthru
      _
    // Predicated region
    $region94: #{tpu_custom_call.1} parent=1 // pred_check
      _
    $region95: #{tpu_custom_call.1} parent=1 // pred_check_branch
      %323 = sbr.rel (0) target = $region97
    $region96: #{tpu_custom_call.1} parent=1 // pred_region
      %324 = dma.done [#allocation21], 2048
    $region97: #{tpu_custom_call.1} parent=1 // pred_fallthru
      _
    %325 = vsyncpa [#allocation3], 1
    %326 = vsyncpa [#allocation6], 1
    %327 = vsyncpa [#allocation9], 1
    %328 = vsyncpa [#allocation12], 1
    %329 = vsyncpa [#allocation15], 1
    %330 = vsyncpa [#allocation4], 1
    %331 = vsyncpa [#allocation18], 1
    %332 = vsyncpa [#allocation21], 1

</llo_original>
